<compile_context>
chip_gen: v5e
topology: v5e:2x2
jax: 0.10.0
libtpu: 0.0.40
codegen_flags: <defaults>
</compile_context>

<pallas_src>
import jax
import jax.numpy as jnp
from jax.experimental import pallas as pl
from jax.experimental.pallas import tpu as pltpu

_LANES = 128
_MAX_BLOCK_ROWS = 2048   # 2048 * 128 * 4B = 1 MiB per f32 block
_ROW_ALIGN = 32          # int8 mask tiling needs sublane dim % 32 == 0
_NCORES = 2              # leading "parallel" grid axis (megacore on v7x)


def _masked_mse_kernel(mean_ref, tgt_ref, mask_ref, sum_ref, cnt_ref,
                       sq_acc, k_acc):
    i = pl.program_id(1)

    @pl.when(i == 0)
    def _():
        sq_acc[...] = jnp.zeros_like(sq_acc)
        k_acc[...] = jnp.zeros_like(k_acc)

    # Upcast to f32 inside the kernel only (inputs stream in native dtype).
    m = mean_ref[...].astype(jnp.float32)
    t = tgt_ref[...].astype(jnp.float32)
    k = mask_ref[...].astype(jnp.float32)

    d = m - t
    sq_acc[...] += d * d * k    # masked squared error, element-wise accumulate
    k_acc[...] += k             # mask count, element-wise accumulate

    # Single reduction at the end of this core's chunk range: collapse the
    # (block_rows, 128) accumulators to one (8, 128) vreg-shaped partial
    # (leading-axis sum = plain VALU vreg adds, lane-dense output store).
    @pl.when(i == pl.num_programs(1) - 1)
    def _():
        br = sq_acc.shape[0]
        sum_ref[...] = jnp.sum(sq_acc[...].reshape(br // 8, 8, _LANES), axis=0)
        cnt_ref[...] = jnp.sum(k_acc[...].reshape(br // 8, 8, _LANES), axis=0)


def _round_up(x, m):
    return (x + m - 1) // m * m


def _as_rows(x, rows):
    """Flatten, zero-pad to rows*128 elements, reshape to (rows, 128)."""
    flat = jnp.ravel(x)
    pad = rows * _LANES - flat.shape[0]
    if pad:
        flat = jnp.pad(flat, (0, pad))
    return flat.reshape(rows, _LANES)


@jax.jit
def masked_mse_loss(inputs, target, mask):
    """inputs: array or dict with key 'mean'; mask: bool / 0-1 array."""
    mean = inputs["mean"] if isinstance(inputs, dict) else inputs

    n = mean.size
    rows_min = pl.cdiv(n, _LANES)
    block_rows = min(_MAX_BLOCK_ROWS, _round_up(rows_min, _ROW_ALIGN))
    chunks = pl.cdiv(rows_min, _NCORES * block_rows)      # per-core steps
    rows = _NCORES * chunks * block_rows

    mean2 = _as_rows(mean, rows)                           # native dtype
    tgt2 = _as_rows(target, rows)                          # native dtype
    mask2 = _as_rows(mask.astype(jnp.int8), rows)          # 1 byte / element

    data_blk = pl.BlockSpec((block_rows, _LANES),
                            lambda c, i: (c * chunks + i, 0))
    out_blk = pl.BlockSpec((8, _LANES), lambda c, i: (c, 0))

    sum_out, cnt_out = pl.pallas_call(
        _masked_mse_kernel,
        out_shape=(
            jax.ShapeDtypeStruct((_NCORES * 8, _LANES), jnp.float32),
            jax.ShapeDtypeStruct((_NCORES * 8, _LANES), jnp.float32),
        ),
        grid_spec=pltpu.PrefetchScalarGridSpec(
            num_scalar_prefetch=0,
            grid=(_NCORES, chunks),
            in_specs=[data_blk, data_blk, data_blk],
            out_specs=(out_blk, out_blk),
            scratch_shapes=[
                pltpu.VMEM((block_rows, _LANES), jnp.float32),
                pltpu.VMEM((block_rows, _LANES), jnp.float32),
            ],
        ),
        compiler_params=pltpu.CompilerParams(
            dimension_semantics=("parallel", "arbitrary")),
    )(mean2, tgt2, mask2)

    total = jnp.sum(sum_out)
    count = jnp.sum(cnt_out)
    # count == 0 -> return raw sum (0.0, since the mask zeroed everything)
    return jnp.where(count == 0, total, total / jnp.maximum(count, 1.0))


def _reference(mean, target, mask):
    diff = (jnp.ravel(mean) - jnp.ravel(target)) ** 2.0
    count = jnp.sum(mask.astype(jnp.int32)).astype(jnp.float32)
    diff = diff * jnp.ravel(mask).astype(jnp.float32)
    return jnp.where(count == 0, jnp.sum(diff), jnp.sum(diff) / count)


if __name__ == "__main__":
    key = jax.random.PRNGKey(0)
    k1, k2, k3 = jax.random.split(key, 3)

    # Small NCHW-like shape, matching the torch module's flattening semantics.
    shape = (2, 4, 16, 16)
    mean = jax.random.normal(k1, shape, dtype=jnp.float32)
    target = jax.random.normal(k2, shape, dtype=jnp.float32)
    mask = jax.random.bernoulli(k3, p=0.5, shape=shape)

    loss = jax.block_until_ready(masked_mse_loss({"mean": mean}, target, mask))
    ref = jax.block_until_ready(_reference(mean, target, mask))
    assert jnp.allclose(loss, ref, rtol=1e-5, atol=1e-5), (loss, ref)

    # count == 0 branch.
    zmask = jnp.zeros(shape, dtype=bool)
    loss0 = jax.block_until_ready(masked_mse_loss({"mean": mean}, target, zmask))
    assert jnp.allclose(loss0, 0.0), loss0

    # Ragged / non-128-divisible total size to exercise tail padding.
    rshape = (3, 5, 7, 9)
    k4, k5, k6 = jax.random.split(jax.random.PRNGKey(1), 3)
    rmean = jax.random.normal(k4, rshape, dtype=jnp.float32)
    rtgt = jax.random.normal(k5, rshape, dtype=jnp.float32)
    rmask = jax.random.bernoulli(k6, p=0.3, shape=rshape)
    rloss = jax.block_until_ready(masked_mse_loss({"mean": rmean}, rtgt, rmask))
    rref = jax.block_until_ready(_reference(rmean, rtgt, rmask))
    assert jnp.allclose(rloss, rref, rtol=1e-5, atol=1e-5), (rloss, rref)

    print("KERNEL_OK")
</pallas_src>

<mosaic_0001>
module attributes {stable_mosaic.version = 11 : i64} {
  func.func @_masked_mse_kernel(%arg0: i32, %arg1: i32, %arg2: memref<32x128xf32, #tpu.memory_space<vmem>>, %arg3: memref<32x128xf32, #tpu.memory_space<vmem>>, %arg4: memref<32x128xi8, #tpu.memory_space<vmem>>, %arg5: memref<8x128xf32, #tpu.memory_space<vmem>>, %arg6: memref<8x128xf32, #tpu.memory_space<vmem>>, %arg7: memref<32x128xf32, #tpu.memory_space<vmem>>, %arg8: memref<32x128xf32, #tpu.memory_space<vmem>>) attributes {dimension_semantics = [#tpu.dimension_semantics<parallel>, #tpu.dimension_semantics<arbitrary>], iteration_bounds = array<i64: 2, 1>, scalar_prefetch = 0 : i64, scratch_operands = 2 : i64, tpu.core_type = #tpu.core_type<tc>, window_params = [{transform_indices = @transform_0, window_bounds = array<i64: 32, 128>}, {transform_indices = @transform_1, window_bounds = array<i64: 32, 128>}, {transform_indices = @transform_2, window_bounds = array<i64: 32, 128>}, {transform_indices = @transform_3, window_bounds = array<i64: 8, 128>}, {transform_indices = @transform_4, window_bounds = array<i64: 8, 128>}]} {
    %c0_i32 = arith.constant 0 : i32
    %0 = arith.cmpi eq, %arg1, %c0_i32 : i32
    %1 = arith.extui %0 : i1 to i32
    %c0_i32_0 = arith.constant 0 : i32
    %2 = arith.cmpi ne, %1, %c0_i32_0 : i32
    scf.if %2 {
      %cst = arith.constant 0.000000e+00 : f32
      %19 = vector.broadcast %cst : f32 to vector<32x128xf32>
      %c0_16 = arith.constant 0 : index
      %c0_17 = arith.constant 0 : index
      %20 = vector.load %arg7[%c0_16, %c0_17] : memref<32x128xf32, #tpu.memory_space<vmem>>, vector<32x128xf32>
      tpu.vector_store %arg7[%c0_16, %c0_17], %19 {strides = array<i32>} : memref<32x128xf32, #tpu.memory_space<vmem>>, vector<32x128xf32>,
      %cst_18 = arith.constant 0.000000e+00 : f32
      %21 = vector.broadcast %cst_18 : f32 to vector<32x128xf32>
      %c0_19 = arith.constant 0 : index
      %c0_20 = arith.constant 0 : index
      %22 = vector.load %arg8[%c0_19, %c0_20] : memref<32x128xf32, #tpu.memory_space<vmem>>, vector<32x128xf32>
      tpu.vector_store %arg8[%c0_19, %c0_20], %21 {strides = array<i32>} : memref<32x128xf32, #tpu.memory_space<vmem>>, vector<32x128xf32>,
    } else {
    }
    %c0 = arith.constant 0 : index
    %c0_1 = arith.constant 0 : index
    %3 = vector.load %arg2[%c0, %c0_1] : memref<32x128xf32, #tpu.memory_space<vmem>>, vector<32x128xf32>
    %c0_2 = arith.constant 0 : index
    %c0_3 = arith.constant 0 : index
    %4 = vector.load %arg3[%c0_2, %c0_3] : memref<32x128xf32, #tpu.memory_space<vmem>>, vector<32x128xf32>
    %c0_4 = arith.constant 0 : index
    %c0_5 = arith.constant 0 : index
    %5 = vector.load %arg4[%c0_4, %c0_5] : memref<32x128xi8, #tpu.memory_space<vmem>>, vector<32x128xi8>
    %6 = arith.sitofp %5 : vector<32x128xi8> to vector<32x128xf32>
    %7 = arith.subf %3, %4 : vector<32x128xf32>
    %c0_6 = arith.constant 0 : index
    %c0_7 = arith.constant 0 : index
    %8 = vector.load %arg7[%c0_6, %c0_7] : memref<32x128xf32, #tpu.memory_space<vmem>>, vector<32x128xf32>
    %9 = arith.mulf %7, %7 : vector<32x128xf32>
    %10 = arith.mulf %9, %6 : vector<32x128xf32>
    %11 = arith.addf %8, %10 : vector<32x128xf32>
    %c0_8 = arith.constant 0 : index
    %c0_9 = arith.constant 0 : index
    %12 = vector.load %arg7[%c0_8, %c0_9] : memref<32x128xf32, #tpu.memory_space<vmem>>, vector<32x128xf32>
    tpu.vector_store %arg7[%c0_8, %c0_9], %11 {strides = array<i32>} : memref<32x128xf32, #tpu.memory_space<vmem>>, vector<32x128xf32>,
    %c0_10 = arith.constant 0 : index
    %c0_11 = arith.constant 0 : index
    %13 = vector.load %arg8[%c0_10, %c0_11] : memref<32x128xf32, #tpu.memory_space<vmem>>, vector<32x128xf32>
    %14 = arith.addf %13, %6 : vector<32x128xf32>
    %c0_12 = arith.constant 0 : index
    %c0_13 = arith.constant 0 : index
    %15 = vector.load %arg8[%c0_12, %c0_13] : memref<32x128xf32, #tpu.memory_space<vmem>>, vector<32x128xf32>
    tpu.vector_store %arg8[%c0_12, %c0_13], %14 {strides = array<i32>} : memref<32x128xf32, #tpu.memory_space<vmem>>, vector<32x128xf32>,
    %c0_i32_14 = arith.constant 0 : i32
    %16 = arith.cmpi eq, %arg1, %c0_i32_14 : i32
    %17 = arith.extui %16 : i1 to i32
    %c0_i32_15 = arith.constant 0 : i32
    %18 = arith.cmpi ne, %17, %c0_i32_15 : i32
    scf.if %18 {
      %c0_16 = arith.constant 0 : index
      %c0_17 = arith.constant 0 : index
      %19 = vector.load %arg7[%c0_16, %c0_17] : memref<32x128xf32, #tpu.memory_space<vmem>>, vector<32x128xf32>
      %20 = vector.shape_cast %19 : vector<32x128xf32> to vector<4x8x128xf32>
      %cst = arith.constant dense<0.000000e+00> : vector<8x128xf32>
      %21 = vector.multi_reduction <add>, %20, %cst [0] : vector<4x8x128xf32> to vector<8x128xf32>
      %c0_18 = arith.constant 0 : index
      %c0_19 = arith.constant 0 : index
      %22 = vector.load %arg5[%c0_18, %c0_19] : memref<8x128xf32, #tpu.memory_space<vmem>>, vector<8x128xf32>
      tpu.vector_store %arg5[%c0_18, %c0_19], %21 {strides = array<i32>} : memref<8x128xf32, #tpu.memory_space<vmem>>, vector<8x128xf32>,
      %c0_20 = arith.constant 0 : index
      %c0_21 = arith.constant 0 : index
      %23 = vector.load %arg8[%c0_20, %c0_21] : memref<32x128xf32, #tpu.memory_space<vmem>>, vector<32x128xf32>
      %24 = vector.shape_cast %23 : vector<32x128xf32> to vector<4x8x128xf32>
      %cst_22 = arith.constant dense<0.000000e+00> : vector<8x128xf32>
      %25 = vector.multi_reduction <add>, %24, %cst_22 [0] : vector<4x8x128xf32> to vector<8x128xf32>
      %c0_23 = arith.constant 0 : index
      %c0_24 = arith.constant 0 : index
      %26 = vector.load %arg6[%c0_23, %c0_24] : memref<8x128xf32, #tpu.memory_space<vmem>>, vector<8x128xf32>
      tpu.vector_store %arg6[%c0_23, %c0_24], %25 {strides = array<i32>} : memref<8x128xf32, #tpu.memory_space<vmem>>, vector<8x128xf32>,
    } else {
    }
    return
  }
  func.func @transform_0(%arg0: i32, %arg1: i32) -> (i32, i32) {
    %c1_i32 = arith.constant 1 : i32
    %0 = arith.muli %arg0, %c1_i32 : i32
    %1 = arith.addi %0, %arg1 : i32
    %c0_i32 = arith.constant 0 : i32
    %c0_i32_0 = arith.constant 0 : i32
    return %1, %c0_i32 : i32, i32
  }
  func.func @transform_1(%arg0: i32, %arg1: i32) -> (i32, i32) {
    %c1_i32 = arith.constant 1 : i32
    %0 = arith.muli %arg0, %c1_i32 : i32
    %1 = arith.addi %0, %arg1 : i32
    %c0_i32 = arith.constant 0 : i32
    %c0_i32_0 = arith.constant 0 : i32
    return %1, %c0_i32 : i32, i32
  }
  func.func @transform_2(%arg0: i32, %arg1: i32) -> (i32, i32) {
    %c1_i32 = arith.constant 1 : i32
    %0 = arith.muli %arg0, %c1_i32 : i32
    %1 = arith.addi %0, %arg1 : i32
    %c0_i32 = arith.constant 0 : i32
    %c0_i32_0 = arith.constant 0 : i32
    return %1, %c0_i32 : i32, i32
  }
  func.func @transform_3(%arg0: i32, %arg1: i32) -> (i32, i32) {
    %c0_i32 = arith.constant 0 : i32
    %c0_i32_0 = arith.constant 0 : i32
    return %arg0, %c0_i32 : i32, i32
  }
  func.func @transform_4(%arg0: i32, %arg1: i32) -> (i32, i32) {
    %c0_i32 = arith.constant 0 : i32
    %c0_i32_0 = arith.constant 0 : i32
    return %arg0, %c0_i32 : i32, i32
  }
}

</mosaic_0001>

<llo_original>
// kernel: masked_mse_loss.1
$region0: #{masked_mse_loss.1}
  #allocation0 [shape = 'u32[]', space=smem, size = 0x4, offset = 0x4, fixed_abs, tag = 'smem constant byte address 0x4 - core index']
  #allocation1 [shape = 'u32[72,128]{1,0:T(1,128)}', space=vmem, size = 0x9000, scoped, tag = 'internal scratch']
  #allocation2 [shape = 'f32[32,128]{1,0:T(8,128)}', space=vmem, size = 0x4000, scoped, tag = 'scratch operand']
  #allocation3 [shape = 'f32[32,128]{1,0:T(8,128)}', space=vmem, size = 0x4000, scoped, tag = 'scratch operand']
  %s0 = inlined_call_operand.vmem [shape: f32[64,128], index: 0, kind: input, shape index: {}]
  %s1 = inlined_call_operand.vmem [shape: f32[64,128], index: 1, kind: input, shape index: {}]
  %s2 = inlined_call_operand.vmem [shape: s8[64,128], index: 2, kind: input, shape index: {}]
  %s3 = inlined_call_operand.vmem [shape: f32[16,128], index: 3, kind: output, shape index: {0}]
  %s4 = inlined_call_operand.vmem [shape: f32[16,128], index: 4, kind: output, shape index: {1}]
  %5 = xla_tuple %s3, %s4
  %s6 = sld [smem:[#allocation0]]
  $region61: #{masked_mse_loss.1} parent=0
    _
  %s8 = ssub.s32 1, %s6
  %s9 = scalar_select 0, %s8, %s6
  loop: start=0, step=1, limit=4
  $region2: #{masked_mse_loss.1} parent=0 // loop_pre_header
    _
  $region3: #{masked_mse_loss.1} parent=0 // loop_header
    %s11 = sphi 0, %s15
    %p12 = scmp.ge.s32.totalorder %s11, 4
    %s18 = sphi 0, %s30
    %s19 = sphi 0, %s26
    %s20 = sphi 0, %s18
    %s21 = sphi 0, %s19
    %s22 = sphi 0, %s20
    %s23 = sphi 0, %s21
    %s35 = sphi 0, %s37
    %s38 = sphi 0, %s35
    %s39 = sphi 0, %s38
    %s55 = sphi 0, %s39
    %s63 = sphi 0, %s65
    %s66 = sphi 0, %s63
    %s67 = sphi 0, %s66
    %s83 = sphi 0, %s67
    %s91 = sphi 0, %s93
    %s94 = sphi 0, %s91
    %s95 = sphi 0, %s94
    %s111 = sphi 0, %s95
    %s117 = sphi 0, %s119
    %s120 = sphi 0, %s117
    %s121 = sphi 0, %s120
    %s137 = sphi 0, %s121
    %s143 = sphi 0, %s145
    %s146 = sphi 0, %s143
    %s147 = sphi 0, %s146
    %s163 = sphi 0, %s147
  $region4: #{masked_mse_loss.1} parent=0 // loop_header_branch
    %14 = sbr.rel (%p12) target = $region8
  $region5: #{masked_mse_loss.1} parent=0 // loop_body
    %s16 = ssub.s32 %s11, 1
    %s17 = ssub.s32 %s11, 2
    %s24 = sadd.s32 1, %s19
    %p25 = scmp.ge.s32.totalorder %s24, 1
    %s26 = scalar_select %p25, 0, %s24
    %s27 = sadd.s32 1, %s18
    %s28 = scalar_select %p25, %s27, %s18
    %p29 = scmp.ge.s32.totalorder %s28, 2
    %s30 = scalar_select %p29, 0, %s28
    %s31 = sadd.s32 %s18, %s19
    %s32 = sadd.s32 %s30, %s26
    %s33 = ssub.s32 %s31, %s32
    %p34 = scmp.eq.s32.totalorder %s33, 0
    %s36 = sadd.s32 %s35, 1
    %s37 = scalar_select %p34, %s35, %s36
    %p40 = pneg %p34
    %p41 = scmp.eq.s32.totalorder %s11, 1
    %p42 = por %p40, %p41
    %p43 = scmp.ne.s32.totalorder %s35, %s38
    %p44 = scmp.eq.s32.totalorder %s11, 0
    %p45 = por %p43, %p44
    %p46 = scmp.ne.s32.totalorder %s35, %s38
    %p47 = scmp.eq.s32.totalorder %s16, 1
    %p48 = por %p46, %p47
    %p49 = scmp.ne.s32.totalorder %s38, %s39
    %p50 = scmp.eq.s32.totalorder %s16, 0
    %p51 = por %p49, %p50
    %p52 = scmp.ne.s32.totalorder %s38, %s39
    %p53 = scmp.eq.s32.totalorder %s17, 1
    %p54 = por %p52, %p53
    %p56 = scmp.ne.s32.totalorder %s39, %s55
    %p57 = scmp.eq.s32.totalorder %s17, 0
    %p58 = por %p56, %p57
    %s59 = sadd.s32 %s18, %s19
    %s60 = sadd.s32 %s30, %s26
    %s61 = ssub.s32 %s59, %s60
    %p62 = scmp.eq.s32.totalorder %s61, 0
    %s64 = sadd.s32 %s63, 1
    %s65 = scalar_select %p62, %s63, %s64
    %p68 = pneg %p62
    %p69 = scmp.eq.s32.totalorder %s11, 1
    %p70 = por %p68, %p69
    %p71 = scmp.ne.s32.totalorder %s63, %s66
    %p72 = scmp.eq.s32.totalorder %s11, 0
    %p73 = por %p71, %p72
    %p74 = scmp.ne.s32.totalorder %s63, %s66
    %p75 = scmp.eq.s32.totalorder %s16, 1
    %p76 = por %p74, %p75
    %p77 = scmp.ne.s32.totalorder %s66, %s67
    %p78 = scmp.eq.s32.totalorder %s16, 0
    %p79 = por %p77, %p78
    %p80 = scmp.ne.s32.totalorder %s66, %s67
    %p81 = scmp.eq.s32.totalorder %s17, 1
    %p82 = por %p80, %p81
    %p84 = scmp.ne.s32.totalorder %s67, %s83
    %p85 = scmp.eq.s32.totalorder %s17, 0
    %p86 = por %p84, %p85
    %s87 = sadd.s32 %s18, %s19
    %s88 = sadd.s32 %s30, %s26
    %s89 = ssub.s32 %s87, %s88
    %p90 = scmp.eq.s32.totalorder %s89, 0
    %s92 = sadd.s32 %s91, 1
    %s93 = scalar_select %p90, %s91, %s92
    %p96 = pneg %p90
    %p97 = scmp.eq.s32.totalorder %s11, 1
    %p98 = por %p96, %p97
    %p99 = scmp.ne.s32.totalorder %s91, %s94
    %p100 = scmp.eq.s32.totalorder %s11, 0
    %p101 = por %p99, %p100
    %p102 = scmp.ne.s32.totalorder %s91, %s94
    %p103 = scmp.eq.s32.totalorder %s16, 1
    %p104 = por %p102, %p103
    %p105 = scmp.ne.s32.totalorder %s94, %s95
    %p106 = scmp.eq.s32.totalorder %s16, 0
    %p107 = por %p105, %p106
    %p108 = scmp.ne.s32.totalorder %s94, %s95
    %p109 = scmp.eq.s32.totalorder %s17, 1
    %p110 = por %p108, %p109
    %p112 = scmp.ne.s32.totalorder %s95, %s111
    %p113 = scmp.eq.s32.totalorder %s17, 0
    %p114 = por %p112, %p113
    %s115 = ssub.s32 %s18, %s30
    %p116 = scmp.eq.s32.totalorder %s115, 0
    %s118 = sadd.s32 %s117, 1
    %s119 = scalar_select %p116, %s117, %s118
    %p122 = pneg %p116
    %p123 = scmp.eq.s32.totalorder %s11, 1
    %p124 = por %p122, %p123
    %p125 = scmp.ne.s32.totalorder %s117, %s120
    %p126 = scmp.eq.s32.totalorder %s11, 0
    %p127 = por %p125, %p126
    %p128 = scmp.ne.s32.totalorder %s117, %s120
    %p129 = scmp.eq.s32.totalorder %s16, 1
    %p130 = por %p128, %p129
    %p131 = scmp.ne.s32.totalorder %s120, %s121
    %p132 = scmp.eq.s32.totalorder %s16, 0
    %p133 = por %p131, %p132
    %p134 = scmp.ne.s32.totalorder %s120, %s121
    %p135 = scmp.eq.s32.totalorder %s17, 1
    %p136 = por %p134, %p135
    %p138 = scmp.ne.s32.totalorder %s121, %s137
    %p139 = scmp.eq.s32.totalorder %s17, 0
    %p140 = por %p138, %p139
    %s141 = ssub.s32 %s18, %s30
    %p142 = scmp.eq.s32.totalorder %s141, 0
    %s144 = sadd.s32 %s143, 1
    %s145 = scalar_select %p142, %s143, %s144
    %p148 = pneg %p142
    %p149 = scmp.eq.s32.totalorder %s11, 1
    %p150 = por %p148, %p149
    %p151 = scmp.ne.s32.totalorder %s143, %s146
    %p152 = scmp.eq.s32.totalorder %s11, 0
    %p153 = por %p151, %p152
    %p154 = scmp.ne.s32.totalorder %s143, %s146
    %p155 = scmp.eq.s32.totalorder %s16, 1
    %p156 = por %p154, %p155
    %p157 = scmp.ne.s32.totalorder %s146, %s147
    %p158 = scmp.eq.s32.totalorder %s16, 0
    %p159 = por %p157, %p158
    %p160 = scmp.ne.s32.totalorder %s146, %s147
    %p161 = scmp.eq.s32.totalorder %s17, 1
    %p162 = por %p160, %p161
    %p164 = scmp.ne.s32.totalorder %s147, %s163
    %p165 = scmp.eq.s32.totalorder %s17, 0
    %p166 = por %p164, %p165
    %p167 = scmp.le.s32.totalorder 1, %s11
    %p168 = scmp.lt.s32.totalorder %s11, 3
    %p169 = pnand %p167, %p168
    %p170 = pneg %p169
    // Predicated region
    $region9: #{masked_mse_loss.1} parent=5 // pred_check
      _
    $region10: #{masked_mse_loss.1} parent=5 // pred_check_branch
      %172 = sbr.rel (%p169) target = $region12
    $region11: #{masked_mse_loss.1} parent=5 // pred_region
      %s173 = ssub.s32 %s11, 1
    $region12: #{masked_mse_loss.1} parent=5 // pred_fallthru
      _
    %p174 = scmp.lt.s32.totalorder %s11, 2
    // Predicated region
    $region13: #{masked_mse_loss.1} parent=5 // pred_check
      %p175 = pneg %p174
    $region14: #{masked_mse_loss.1} parent=5 // pred_check_branch
      %177 = sbr.rel (%p175) target = $region16
    $region15: #{masked_mse_loss.1} parent=5 // pred_region
      // Predicated region
      $region17: #{masked_mse_loss.1} parent=15 // pred_check
        %p178 = pneg %p45
      $region18: #{masked_mse_loss.1} parent=15 // pred_check_branch
        %180 = sbr.rel (%p178) target = $region20
      $region19: #{masked_mse_loss.1} parent=15 // pred_region
        %s181 = sadd.s32 %s18, %s19
        %s182 = smul.u32 4, %s181
        %p183 = scmp.lt.s32.totalorder %s182, 7
        %s184 = scalar_select %p183, %s182, 7
        %s185 = smul.addr %s184, 8
        %s186 = scalar_lea.vmem %s0, %s185
        %s187 = sadd.s32 %s18, %s19
        %s188 = smul.u32 4, %s187
      $region20: #{masked_mse_loss.1} parent=15 // pred_fallthru
        _
      // Predicated region
      $region21: #{masked_mse_loss.1} parent=15 // pred_check
        %p189 = pneg %p73
      $region22: #{masked_mse_loss.1} parent=15 // pred_check_branch
        %191 = sbr.rel (%p189) target = $region24
      $region23: #{masked_mse_loss.1} parent=15 // pred_region
        %s192 = sadd.s32 %s18, %s19
        %s193 = smul.u32 4, %s192
        %p194 = scmp.lt.s32.totalorder %s193, 7
        %s195 = scalar_select %p194, %s193, 7
        %s196 = smul.addr %s195, 8
        %s197 = scalar_lea.vmem %s1, %s196
        %s198 = sadd.s32 %s18, %s19
        %s199 = smul.u32 4, %s198
      $region24: #{masked_mse_loss.1} parent=15 // pred_fallthru
        _
      // Predicated region
      $region25: #{masked_mse_loss.1} parent=15 // pred_check
        %p200 = pneg %p101
      $region26: #{masked_mse_loss.1} parent=15 // pred_check_branch
        %202 = sbr.rel (%p200) target = $region28
      $region27: #{masked_mse_loss.1} parent=15 // pred_region
        %s203 = sadd.s32 %s18, %s19
        %p204 = scmp.lt.s32.totalorder %s203, 1
        %s205 = scalar_select %p204, %s203, 1
        %s206 = smul.addr %s205, 8
        %s207 = scalar_lea.vmem %s2, %s206
        %s208 = sadd.s32 %s18, %s19
      $region28: #{masked_mse_loss.1} parent=15 // pred_fallthru
        _
    $region16: #{masked_mse_loss.1} parent=5 // pred_fallthru
      _
    %p209 = scmp.le.s32.totalorder 1, %s11
    %p210 = scmp.lt.s32.totalorder %s11, 3
    %p211 = pnand %p209, %p210
    %p212 = pneg %p211
    // Predicated region
    $region29: #{masked_mse_loss.1} parent=5 // pred_check
      _
    $region30: #{masked_mse_loss.1} parent=5 // pred_check_branch
      %214 = sbr.rel (%p211) target = $region32
    $region31: #{masked_mse_loss.1} parent=5 // pred_region
      %s215 = ssub.s32 %s11, 1
      %s216 = sadd.s32 %s20, %s21
      %s217 = smul.u32 4, %s216
      %p218 = scmp.lt.s32.totalorder %s217, 7
      %s219 = scalar_select %p218, %s217, 7
      %s220 = smul.addr %s219, 8
      %s221 = scalar_lea.vmem %s0, %s220
      %p222 = pneg %p51
      %p223 = pneg %p48
      %s224 = sadd.s32 %s20, %s21
      %s225 = smul.u32 4, %s224
      %p226 = scmp.lt.s32.totalorder %s225, 7
      %s227 = scalar_select %p226, %s225, 7
      %s228 = smul.addr %s227, 8
      %s229 = scalar_lea.vmem %s1, %s228
      %p230 = pneg %p79
      %p231 = pneg %p76
      %s232 = sadd.s32 %s20, %s21
      %p233 = scmp.lt.s32.totalorder %s232, 1
      %s234 = scalar_select %p233, %s232, 1
      %s235 = smul.addr %s234, 8
      %s236 = scalar_lea.vmem %s2, %s235
      %p237 = pneg %p107
      %p238 = pneg %p104
      %p239 = pneg %p133
      %p240 = pneg %p130
      %p241 = scmp.lt.s32.totalorder %s20, 1
      %s242 = scalar_select %p241, %s20, 1
      %s243 = smul.addr %s242, 8
      %s244 = scalar_lea.vmem %s3, %s243
      %p245 = pneg %p159
      %p246 = pneg %p156
      %p247 = scmp.lt.s32.totalorder %s20, 1
      %s248 = scalar_select %p247, %s20, 1
      %s249 = smul.addr %s248, 8
      %s250 = scalar_lea.vmem %s4, %s249
      %s251 = sadd.s32 %s20, %s21
      %s252 = smul.u32 4, %s251
      %p253 = scmp.lt.s32.totalorder %s252, 7
      %s254 = scalar_select %p253, %s252, 7
      %s255 = smul.addr %s254, 8
      %s256 = scalar_lea.vmem %s0, %s255
      %s257 = sadd.s32 %s20, %s21
      %s258 = smul.u32 4, %s257
      %s259 = sadd.s32 %s20, %s21
      %s260 = smul.u32 4, %s259
      %p261 = scmp.lt.s32.totalorder %s260, 7
      %s262 = scalar_select %p261, %s260, 7
      %s263 = smul.addr %s262, 8
      %s264 = scalar_lea.vmem %s1, %s263
      %s265 = sadd.s32 %s20, %s21
      %s266 = smul.u32 4, %s265
      %s267 = sadd.s32 %s20, %s21
      %p268 = scmp.lt.s32.totalorder %s267, 1
      %s269 = scalar_select %p268, %s267, 1
      %s270 = smul.addr %s269, 8
      %s271 = scalar_lea.vmem %s2, %s270
      %s272 = sadd.s32 %s20, %s21
      %p273 = scmp.lt.s32.totalorder %s20, 1
      %s274 = scalar_select %p273, %s20, 1
      %s275 = smul.addr %s274, 8
      %s276 = scalar_lea.vmem %s3, %s275
      %p277 = scmp.lt.s32.totalorder %s20, 1
      %s278 = scalar_select %p277, %s20, 1
      %s279 = smul.addr %s278, 8
      %s280 = scalar_lea.vmem %s4, %s279
      %p281 = scmp.eq.s32.totalorder %s21, 0
      // Predicated region
      $region33: #{masked_mse_loss.1} parent=31 // pred_check
        %p282 = pneg %p281
      $region34: #{masked_mse_loss.1} parent=31 // pred_check_branch
        %284 = sbr.rel (%p282) target = $region36
      $region35: #{masked_mse_loss.1} parent=31 // pred_region
        %285 = vst [vmem:[#allocation2] sm:$0xff] 0.0
        %286 = vst [vmem:[#allocation2 + $0x8] sm:$0xff] 0.0
        %287 = vst [vmem:[#allocation2 + $0x10] sm:$0xff] 0.0
        %288 = vst [vmem:[#allocation2 + $0x18] sm:$0xff] 0.0
        %289 = vst [vmem:[#allocation3] sm:$0xff] 0.0
        %290 = vst [vmem:[#allocation3 + $0x8] sm:$0xff] 0.0
        %291 = vst [vmem:[#allocation3 + $0x10] sm:$0xff] 0.0
        %292 = vst [vmem:[#allocation3 + $0x18] sm:$0xff] 0.0
      $region36: #{masked_mse_loss.1} parent=31 // pred_fallthru
        _
      %v293 = vld [vmem:[%s256] sm:$0xff]
      %v294 = vld [vmem:[%s256 + $0x8] sm:$0xff]
      %v295 = vld [vmem:[%s256 + $0x10] sm:$0xff]
      %v296 = vld [vmem:[%s256 + $0x18] sm:$0xff]
      %v297 = vld [vmem:[%s264] sm:$0xff]
      %v298 = vld [vmem:[%s264 + $0x8] sm:$0xff]
      %v299 = vld [vmem:[%s264 + $0x10] sm:$0xff]
      %v300 = vld [vmem:[%s264 + $0x18] sm:$0xff]
      %v301 = vld [vmem:[%s271] sm:$0xff]
      %v302 = vunpack.c.0.s8 %v301
      %v303 = vunpack.c.1.s8 %v301
      %v304 = vunpack.c.2.s8 %v301
      %v305 = vunpack.c.3.s8 %v301
      %v306 = vcvt.s32.f32 %v302
      %v307 = vcvt.s32.f32 %v303
      %v308 = vcvt.s32.f32 %v304
      %v309 = vcvt.s32.f32 %v305
      %v310 = vsub.f32 %v293, %v297
      %v311 = vsub.f32 %v294, %v298
      %v312 = vsub.f32 %v295, %v299
      %v313 = vsub.f32 %v296, %v300
      %v314 = vld [vmem:[#allocation2] sm:$0xff]
      %v315 = vld [vmem:[#allocation2 + $0x8] sm:$0xff]
      %v316 = vld [vmem:[#allocation2 + $0x10] sm:$0xff]
      %v317 = vld [vmem:[#allocation2 + $0x18] sm:$0xff]
      %v318 = vmul.f32 %v310, %v310
      %v319 = vmul.f32 %v311, %v311
      %v320 = vmul.f32 %v312, %v312
      %v321 = vmul.f32 %v313, %v313
      %v322 = vmul.f32 %v318, %v306
      %v323 = vmul.f32 %v319, %v307
      %v324 = vmul.f32 %v320, %v308
      %v325 = vmul.f32 %v321, %v309
      %v326 = vadd.f32 %v314, %v322
      %v327 = vadd.f32 %v315, %v323
      %v328 = vadd.f32 %v316, %v324
      %v329 = vadd.f32 %v317, %v325
      %330 = vst [vmem:[#allocation2] sm:$0xff] %v326
      %331 = vst [vmem:[#allocation2 + $0x8] sm:$0xff] %v327
      %332 = vst [vmem:[#allocation2 + $0x10] sm:$0xff] %v328
      %333 = vst [vmem:[#allocation2 + $0x18] sm:$0xff] %v329
      %v334 = vld [vmem:[#allocation3] sm:$0xff]
      %v335 = vld [vmem:[#allocation3 + $0x8] sm:$0xff]
      %v336 = vld [vmem:[#allocation3 + $0x10] sm:$0xff]
      %v337 = vld [vmem:[#allocation3 + $0x18] sm:$0xff]
      %v338 = vadd.f32 %v334, %v306
      %v339 = vadd.f32 %v335, %v307
      %v340 = vadd.f32 %v336, %v308
      %v341 = vadd.f32 %v337, %v309
      %342 = vst [vmem:[#allocation3] sm:$0xff] %v338
      %343 = vst [vmem:[#allocation3 + $0x8] sm:$0xff] %v339
      %344 = vst [vmem:[#allocation3 + $0x10] sm:$0xff] %v340
      %345 = vst [vmem:[#allocation3 + $0x18] sm:$0xff] %v341
      // Predicated region
      $region37: #{masked_mse_loss.1} parent=31 // pred_check
        %p346 = pneg %p281
      $region38: #{masked_mse_loss.1} parent=31 // pred_check_branch
        %348 = sbr.rel (%p346) target = $region40
      $region39: #{masked_mse_loss.1} parent=31 // pred_region
        %v349 = vld [vmem:[#allocation2] sm:$0xff]
        %v350 = vld [vmem:[#allocation2 + $0x8] sm:$0xff]
        %v351 = vld [vmem:[#allocation2 + $0x10] sm:$0xff]
        %v352 = vld [vmem:[#allocation2 + $0x18] sm:$0xff]
        %v353 = vadd.f32 %v349, %v350
        %v354 = vadd.f32 %v353, %v351
        %v355 = vadd.f32 %v354, %v352
        %356 = vst [vmem:[%s276] sm:$0xff] %v355
        %v357 = vld [vmem:[#allocation3] sm:$0xff]
        %v358 = vld [vmem:[#allocation3 + $0x8] sm:$0xff]
        %v359 = vld [vmem:[#allocation3 + $0x10] sm:$0xff]
        %v360 = vld [vmem:[#allocation3 + $0x18] sm:$0xff]
        %v361 = vadd.f32 %v357, %v358
        %v362 = vadd.f32 %v361, %v359
        %v363 = vadd.f32 %v362, %v360
        %364 = vst [vmem:[%s280] sm:$0xff] %v363
      $region40: #{masked_mse_loss.1} parent=31 // pred_fallthru
        _
      %p365 = scmp.lt.s32.totalorder %s20, 1
      %s366 = scalar_select %p365, %s20, 1
      %s367 = smul.addr %s366, 8
      %s368 = scalar_lea.vmem %s3, %s367
      %p369 = scmp.lt.s32.totalorder %s20, 1
      %s370 = scalar_select %p369, %s20, 1
      %s371 = smul.addr %s370, 8
      %s372 = scalar_lea.vmem %s4, %s371
      // Predicated region
      $region41: #{masked_mse_loss.1} parent=31 // pred_check
        %p373 = pneg %p130
      $region42: #{masked_mse_loss.1} parent=31 // pred_check_branch
        %375 = sbr.rel (%p373) target = $region44
      $region43: #{masked_mse_loss.1} parent=31 // pred_region
        _
      $region44: #{masked_mse_loss.1} parent=31 // pred_fallthru
        _
      // Predicated region
      $region45: #{masked_mse_loss.1} parent=31 // pred_check
        %p376 = pneg %p156
      $region46: #{masked_mse_loss.1} parent=31 // pred_check_branch
        %378 = sbr.rel (%p376) target = $region48
      $region47: #{masked_mse_loss.1} parent=31 // pred_region
        _
      $region48: #{masked_mse_loss.1} parent=31 // pred_fallthru
        _
    $region32: #{masked_mse_loss.1} parent=5 // pred_fallthru
      _
    %p379 = scmp.le.s32.totalorder 2, %s11
    // Predicated region
    $region49: #{masked_mse_loss.1} parent=5 // pred_check
      %p380 = pneg %p379
    $region50: #{masked_mse_loss.1} parent=5 // pred_check_branch
      %382 = sbr.rel (%p380) target = $region52
    $region51: #{masked_mse_loss.1} parent=5 // pred_region
      %s383 = ssub.s32 %s11, 2
      // Predicated region
      $region53: #{masked_mse_loss.1} parent=51 // pred_check
        %p384 = pneg %p136
      $region54: #{masked_mse_loss.1} parent=51 // pred_check_branch
        %386 = sbr.rel (%p384) target = $region56
      $region55: #{masked_mse_loss.1} parent=51 // pred_region
        %p387 = scmp.lt.s32.totalorder %s22, 1
        %s388 = scalar_select %p387, %s22, 1
        %s389 = smul.addr %s388, 8
        %s390 = scalar_lea.vmem %s3, %s389
      $region56: #{masked_mse_loss.1} parent=51 // pred_fallthru
        _
      // Predicated region
      $region57: #{masked_mse_loss.1} parent=51 // pred_check
        %p391 = pneg %p162
      $region58: #{masked_mse_loss.1} parent=51 // pred_check_branch
        %393 = sbr.rel (%p391) target = $region60
      $region59: #{masked_mse_loss.1} parent=51 // pred_region
        %p394 = scmp.lt.s32.totalorder %s22, 1
        %s395 = scalar_select %p394, %s22, 1
        %s396 = smul.addr %s395, 8
        %s397 = scalar_lea.vmem %s4, %s396
      $region60: #{masked_mse_loss.1} parent=51 // pred_fallthru
        _
    $region52: #{masked_mse_loss.1} parent=5 // pred_fallthru
      _
  $region6: #{masked_mse_loss.1} parent=0 // loop_footer
    %s15 = sadd.s32 1, %s11
  $region7: #{masked_mse_loss.1} parent=0 // loop_footer_branch
    %10 = sbr.rel target = $region3
  $region8: #{masked_mse_loss.1} parent=0 // loop_exit
    _

</llo_original>
